<compile_context>
chip_gen: v7x
topology: tpu7x:2x2x1
jax: 0.10.0
libtpu: 0.0.40
codegen_flags: <defaults>
</compile_context>

<pallas_src>
import jax
import jax.numpy as jnp
from jax.experimental import pallas as pl
from jax.experimental.pallas import tpu as pltpu


def generator_kernel(x_ref,
                     w1_ref, b1_ref,
                     w2_ref, b2_ref,
                     w3_ref, b3_ref,
                     w4_ref, b4_ref,
                     o_ref):
    cdt = w1_ref.dtype  # MXU feed dtype (bf16 or f32)
    out_dim = o_ref.shape[-1]

    # Layer 1: Linear + ReLU   (MXU matmul, f32 accumulation; epilogue in f32)
    h = jnp.dot(x_ref[...].astype(cdt), w1_ref[...],
                preferred_element_type=jnp.float32)
    h = jnp.maximum(h + b1_ref[...], 0.0)
    # Layer 2: Linear + ReLU
    h = jnp.dot(h.astype(cdt), w2_ref[...], preferred_element_type=jnp.float32)
    h = jnp.maximum(h + b2_ref[...], 0.0)
    # Layer 3: Linear + ReLU
    h = jnp.dot(h.astype(cdt), w3_ref[...], preferred_element_type=jnp.float32)
    h = jnp.maximum(h + b3_ref[...], 0.0)
    # Layer 4: Linear + Tanh (computed at lane-padded width, stored unpadded)
    h = jnp.dot(h.astype(cdt), w4_ref[...], preferred_element_type=jnp.float32)
    h = jnp.tanh(h + b4_ref[...])
    o_ref[...] = h[:, :out_dim].astype(o_ref.dtype)


def _round_up(x, m):
    return pl.cdiv(x, m) * m


def _default_vmem_limit():
    """~3/4 of physical VMEM: ~48 MiB on v7x (64 MiB), ~96 MiB on v5e/v6e (128 MiB)."""
    try:
        cap = int(pltpu.get_tpu_info().vmem_capacity_bytes)
    except Exception:
        cap = 64 * 1024 * 1024  # conservative (v7x) fallback
    return max(32 * 1024 * 1024, (cap * 3) // 4)


def prepare_generator_params(params, compute_dtype=jnp.bfloat16):
    """One-time weight prep (hoisted out of the per-call path).

    Pads the last layer's output width to a lane multiple (128) for the
    in-VMEM MXU compute only, and casts weights to the MXU feed dtype.
    """
    (w1, b1), (w2, b2), (w3, b3), (w4, b4) = params
    out_dim = int(w4.shape[1])
    out_dim_p = int(_round_up(out_dim, 128))
    if out_dim_p != out_dim:
        w4 = jnp.pad(w4, ((0, 0), (0, out_dim_p - out_dim)))
        b4 = jnp.pad(jnp.reshape(b4, (1, -1)), ((0, 0), (0, out_dim_p - out_dim)))
    weights = tuple(w.astype(compute_dtype) for w in (w1, w2, w3, w4))
    biases = tuple(jnp.reshape(b, (1, -1)).astype(jnp.float32)
                   for b in (b1, b2, b3, b4))
    return {"weights": weights, "biases": biases, "out_dim": out_dim}


def generator_forward(noise, prepared, *, block_b=1024,
                      out_dtype=jnp.bfloat16, vmem_limit_bytes=None):
    """4-layer MLP forward as a single batch-tiled Pallas kernel."""
    if noise.ndim != 2:
        raise ValueError("noise must be a 2D tensor")
    w1c, w2c, w3c, w4c = prepared["weights"]
    b1f, b2f, b3f, b4f = prepared["biases"]
    out_dim = int(prepared["out_dim"])

    B, noise_dim = noise.shape
    h1, h2, h3 = w1c.shape[1], w2c.shape[1], w3c.shape[1]
    out_dim_p = w4c.shape[1]

    if vmem_limit_bytes is None:
        vmem_limit_bytes = _default_vmem_limit()
    vmem_limit_bytes = int(vmem_limit_bytes)

    out_itemsize = jnp.dtype(out_dtype).itemsize
    weight_bytes = sum(int(w.size) * w.dtype.itemsize for w in (w1c, w2c, w3c, w4c))
    bias_bytes = sum(int(b.size) * 4 for b in (b1f, b2f, b3f, b4f))

    # --- batch-tile selection --------------------------------------------
    # (a) VMEM budget: double-buffered I/O tiles + f32/bf16 intermediates.
    row_bytes = (2 * noise_dim * noise.dtype.itemsize          # in tile, 2 bufs
                 + 2 * out_dim * out_itemsize                  # out tile, 2 bufs
                 + (h1 + h2 + h3 + out_dim_p) * 6)             # f32 act + bf16 cast
    budget = vmem_limit_bytes - weight_bytes - bias_bytes - (2 << 20)
    vmem_tb = max(8, (budget // max(row_bytes, 1) // 8) * 8) if budget > 0 else 8
    # (b) >=2 grid steps when possible (v7x megacore, pipelining overlap).
    b8 = int(_round_up(B, 8))
    half_cap = max(8, (b8 // 16) * 8) if b8 >= 16 else b8
    # (c) user cap, forced to a multiple of 8 (f32 sublane rule).
    tb = int(max(8, (min(block_b, b8, half_cap, vmem_tb) // 8) * 8))

    B_p = int(_round_up(B, tb))
    noise_p = noise if B_p == B else jnp.pad(noise, ((0, B_p - B), (0, 0)))
    grid = (B_p // tb,)

    in_arrays = (noise_p, w1c, b1f, w2c, b2f, w3c, b3f, w4c, b4f)

    flops = 2 * B_p * (noise_dim * h1 + h1 * h2 + h2 * h3 + h3 * out_dim_p)
    bytes_accessed = (int(noise_p.size) * noise_p.dtype.itemsize
                      + B_p * out_dim * out_itemsize
                      + weight_bytes + bias_bytes)

    def tile_spec(shape):          # tiled along batch
        return pl.BlockSpec(shape, lambda i: (i, 0))

    def build_call(single_buffer_weights):
        def resident_spec(shape):  # whole array, resident across all grid steps
            if single_buffer_weights:
                return pl.BlockSpec(shape, lambda i: (0, 0),
                                    pipeline_mode=pl.Buffered(1))
            return pl.BlockSpec(shape, lambda i: (0, 0))

        in_specs = ([tile_spec((tb, noise_dim))]
                    + [resident_spec(a.shape) for a in in_arrays[1:]])
        return pl.pallas_call(
            generator_kernel,
            out_shape=jax.ShapeDtypeStruct((B_p, out_dim), out_dtype),
            grid=grid,
            in_specs=in_specs,
            out_specs=tile_spec((tb, out_dim)),
            compiler_params=pltpu.CompilerParams(
                dimension_semantics=("parallel",),
                vmem_limit_bytes=vmem_limit_bytes),
            cost_estimate=pl.CostEstimate(
                flops=int(flops),
                transcendentals=int(B_p * out_dim_p),
                bytes_accessed=int(bytes_accessed)),
        )

    try:
        out = build_call(True)(*in_arrays)
    except Exception:
        # Fallback if single-buffered resident specs are rejected by this
        # jax/Mosaic version; default double-buffering is only a VMEM cost.
        out = build_call(False)(*in_arrays)

    return out if B_p == B else out[:B]


def init_generator_params(key, noise_dim, hidden_dim, output_dim):
    """Deterministic synthetic parameter init (uniform, Linear-like fan-in scale)."""
    dims = [noise_dim, hidden_dim, hidden_dim * 2, hidden_dim * 4, output_dim]
    params = []
    for i in range(4):
        key, kw, kb = jax.random.split(key, 3)
        fan_in = dims[i]
        bound = 1.0 / float(jnp.sqrt(fan_in))
        w = jax.random.uniform(kw, (dims[i], dims[i + 1]), jnp.float32,
                               minval=-bound, maxval=bound)
        b = jax.random.uniform(kb, (1, dims[i + 1]), jnp.float32,
                               minval=-bound, maxval=bound)
        params.append((w, b))
    return params


def reference_forward(noise, params):
    h = noise
    for i, (w, b) in enumerate(params):
        h = jnp.dot(h, w, preferred_element_type=jnp.float32,
                    precision=jax.lax.Precision.HIGHEST) + b
        h = jnp.maximum(h, 0.0) if i < 3 else jnp.tanh(h)
    return h


if __name__ == "__main__":
    noise_dim, hidden_dim, output_dim = 16, 32, 24
    batch = 8

    key = jax.random.PRNGKey(0)
    key, knoise = jax.random.split(key)
    noise = jax.random.normal(knoise, (batch, noise_dim), dtype=jnp.float32)
    params = init_generator_params(key, noise_dim, hidden_dim, output_dim)
    ref = reference_forward(noise, params)

    # 1) f32 compute / f32 output path: tight correctness check.
    prep_f32 = prepare_generator_params(params, compute_dtype=jnp.float32)
    out_f32 = jax.block_until_ready(
        generator_forward(noise, prep_f32, out_dtype=jnp.float32))
    assert out_f32.shape == (batch, output_dim)
    assert jnp.allclose(out_f32, ref, atol=1e-4, rtol=1e-4), "f32 mismatch vs reference"

    # 2) bf16 MXU-feed, bf16 output path (default / optimized): loose tolerance.
    prep_bf16 = prepare_generator_params(params)   # prep hoisted out of the call
    out_bf16 = jax.block_until_ready(generator_forward(noise, prep_bf16))
    assert out_bf16.shape == (batch, output_dim)
    assert jnp.allclose(out_bf16.astype(jnp.float32), ref,
                        atol=5e-2, rtol=5e-2), "bf16 mismatch vs reference"

    # 3) Multi-tile grid with batch padding + odd block_b (tiling/rounding logic).
    key, knoise2 = jax.random.split(key)
    noise2 = jax.random.normal(knoise2, (200, noise_dim), dtype=jnp.float32)
    out2 = jax.block_until_ready(
        generator_forward(noise2, prep_bf16, block_b=100))
    ref2 = reference_forward(noise2, params)
    assert out2.shape == (200, output_dim)
    assert jnp.allclose(out2.astype(jnp.float32), ref2,
                        atol=5e-2, rtol=5e-2), "tiled mismatch vs reference"

    print("KERNEL_OK")
</pallas_src>

<mosaic_0001>
module attributes {stable_mosaic.version = 11 : i64} {
  func.func @generator_kernel(%arg0: i32, %arg1: memref<8x16xf32, #tpu.memory_space<vmem>>, %arg2: memref<16x32xf32, #tpu.memory_space<vmem>>, %arg3: memref<1x32xf32, #tpu.memory_space<vmem>>, %arg4: memref<32x64xf32, #tpu.memory_space<vmem>>, %arg5: memref<1x64xf32, #tpu.memory_space<vmem>>, %arg6: memref<64x128xf32, #tpu.memory_space<vmem>>, %arg7: memref<1x128xf32, #tpu.memory_space<vmem>>, %arg8: memref<128x128xf32, #tpu.memory_space<vmem>>, %arg9: memref<1x128xf32, #tpu.memory_space<vmem>>, %arg10: memref<8x24xf32, #tpu.memory_space<vmem>>) attributes {dimension_semantics = [#tpu.dimension_semantics<parallel>], iteration_bounds = array<i64: 1>, scalar_prefetch = 0 : i64, scratch_operands = 0 : i64, tpu.core_type = #tpu.core_type<tc>, window_params = [{transform_indices = @transform_0, window_bounds = array<i64: 8, 16>}, {pipeline_mode = #tpu.pipeline_mode<synchronous>, transform_indices = @transform_1, window_bounds = array<i64: 16, 32>}, {pipeline_mode = #tpu.pipeline_mode<synchronous>, transform_indices = @transform_2, window_bounds = array<i64: 1, 32>}, {pipeline_mode = #tpu.pipeline_mode<synchronous>, transform_indices = @transform_3, window_bounds = array<i64: 32, 64>}, {pipeline_mode = #tpu.pipeline_mode<synchronous>, transform_indices = @transform_4, window_bounds = array<i64: 1, 64>}, {pipeline_mode = #tpu.pipeline_mode<synchronous>, transform_indices = @transform_5, window_bounds = array<i64: 64, 128>}, {pipeline_mode = #tpu.pipeline_mode<synchronous>, transform_indices = @transform_6, window_bounds = array<i64: 1, 128>}, {pipeline_mode = #tpu.pipeline_mode<synchronous>, transform_indices = @transform_7, window_bounds = array<i64: 128, 128>}, {pipeline_mode = #tpu.pipeline_mode<synchronous>, transform_indices = @transform_8, window_bounds = array<i64: 1, 128>}, {transform_indices = @transform_9, window_bounds = array<i64: 8, 24>}]} {
    %c0 = arith.constant 0 : index
    %c0_0 = arith.constant 0 : index
    %0 = vector.load %arg1[%c0, %c0_0] : memref<8x16xf32, #tpu.memory_space<vmem>>, vector<8x16xf32>
    %c0_1 = arith.constant 0 : index
    %c0_2 = arith.constant 0 : index
    %1 = vector.load %arg2[%c0_1, %c0_2] : memref<16x32xf32, #tpu.memory_space<vmem>>, vector<16x32xf32>
    %cst = arith.constant dense<0.000000e+00> : vector<8x32xf32>
    %2 = tpu.matmul %0, %1, %cst {dimension_numbers = #tpu.dot_dimension_numbers<[1], [0], [0], [1], [0, 0, 1, 1], [], []>} : vector<8x16xf32>, vector<16x32xf32>, vector<8x32xf32> -> vector<8x32xf32>
    %c0_3 = arith.constant 0 : index
    %c0_4 = arith.constant 0 : index
    %3 = vector.load %arg3[%c0_3, %c0_4] : memref<1x32xf32, #tpu.memory_space<vmem>>, vector<1x32xf32>
    %4 = vector.broadcast %3 : vector<1x32xf32> to vector<8x32xf32>
    %5 = arith.addf %2, %4 : vector<8x32xf32>
    %cst_5 = arith.constant 0.000000e+00 : f32
    %6 = vector.broadcast %cst_5 : f32 to vector<8x32xf32>
    %7 = arith.maximumf %5, %6 : vector<8x32xf32>
    %c0_6 = arith.constant 0 : index
    %c0_7 = arith.constant 0 : index
    %8 = vector.load %arg4[%c0_6, %c0_7] : memref<32x64xf32, #tpu.memory_space<vmem>>, vector<32x64xf32>
    %cst_8 = arith.constant dense<0.000000e+00> : vector<8x64xf32>
    %9 = tpu.matmul %7, %8, %cst_8 {dimension_numbers = #tpu.dot_dimension_numbers<[1], [0], [0], [1], [0, 0, 1, 1], [], []>} : vector<8x32xf32>, vector<32x64xf32>, vector<8x64xf32> -> vector<8x64xf32>
    %c0_9 = arith.constant 0 : index
    %c0_10 = arith.constant 0 : index
    %10 = vector.load %arg5[%c0_9, %c0_10] : memref<1x64xf32, #tpu.memory_space<vmem>>, vector<1x64xf32>
    %11 = vector.broadcast %10 : vector<1x64xf32> to vector<8x64xf32>
    %12 = arith.addf %9, %11 : vector<8x64xf32>
    %cst_11 = arith.constant 0.000000e+00 : f32
    %13 = vector.broadcast %cst_11 : f32 to vector<8x64xf32>
    %14 = arith.maximumf %12, %13 : vector<8x64xf32>
    %c0_12 = arith.constant 0 : index
    %c0_13 = arith.constant 0 : index
    %15 = vector.load %arg6[%c0_12, %c0_13] : memref<64x128xf32, #tpu.memory_space<vmem>>, vector<64x128xf32>
    %cst_14 = arith.constant dense<0.000000e+00> : vector<8x128xf32>
    %16 = tpu.matmul %14, %15, %cst_14 {dimension_numbers = #tpu.dot_dimension_numbers<[1], [0], [0], [1], [0, 0, 1, 1], [], []>} : vector<8x64xf32>, vector<64x128xf32>, vector<8x128xf32> -> vector<8x128xf32>
    %c0_15 = arith.constant 0 : index
    %c0_16 = arith.constant 0 : index
    %17 = vector.load %arg7[%c0_15, %c0_16] : memref<1x128xf32, #tpu.memory_space<vmem>>, vector<1x128xf32>
    %18 = vector.broadcast %17 : vector<1x128xf32> to vector<8x128xf32>
    %19 = arith.addf %16, %18 : vector<8x128xf32>
    %cst_17 = arith.constant 0.000000e+00 : f32
    %20 = vector.broadcast %cst_17 : f32 to vector<8x128xf32>
    %21 = arith.maximumf %19, %20 : vector<8x128xf32>
    %c0_18 = arith.constant 0 : index
    %c0_19 = arith.constant 0 : index
    %22 = vector.load %arg8[%c0_18, %c0_19] : memref<128x128xf32, #tpu.memory_space<vmem>>, vector<128x128xf32>
    %cst_20 = arith.constant dense<0.000000e+00> : vector<8x128xf32>
    %23 = tpu.matmul %21, %22, %cst_20 {dimension_numbers = #tpu.dot_dimension_numbers<[1], [0], [0], [1], [0, 0, 1, 1], [], []>} : vector<8x128xf32>, vector<128x128xf32>, vector<8x128xf32> -> vector<8x128xf32>
    %c0_21 = arith.constant 0 : index
    %c0_22 = arith.constant 0 : index
    %24 = vector.load %arg9[%c0_21, %c0_22] : memref<1x128xf32, #tpu.memory_space<vmem>>, vector<1x128xf32>
    %25 = vector.broadcast %24 : vector<1x128xf32> to vector<8x128xf32>
    %26 = arith.addf %23, %25 : vector<8x128xf32>
    %27 = math.tanh %26 : vector<8x128xf32>
    %28 = vector.extract_strided_slice %27 {offsets = [0, 0], sizes = [8, 24], strides = [1, 1]} : vector<8x128xf32> to vector<8x24xf32>
    %c0_23 = arith.constant 0 : index
    %c0_24 = arith.constant 0 : index
    %29 = vector.load %arg10[%c0_23, %c0_24] : memref<8x24xf32, #tpu.memory_space<vmem>>, vector<8x24xf32>
    tpu.vector_store %arg10[%c0_23, %c0_24], %28 {strides = array<i32>} : memref<8x24xf32, #tpu.memory_space<vmem>>, vector<8x24xf32>,
    return
  }
  func.func @transform_0(%arg0: i32) -> (i32, i32) {
    %c0_i32 = arith.constant 0 : i32
    %c0_i32_0 = arith.constant 0 : i32
    return %arg0, %c0_i32 : i32, i32
  }
  func.func @transform_1(%arg0: i32) -> (i32, i32) {
    %c0_i32 = arith.constant 0 : i32
    %c0_i32_0 = arith.constant 0 : i32
    %c0_i32_1 = arith.constant 0 : i32
    return %c0_i32, %c0_i32_0 : i32, i32
  }
  func.func @transform_2(%arg0: i32) -> (i32, i32) {
    %c0_i32 = arith.constant 0 : i32
    %c0_i32_0 = arith.constant 0 : i32
    %c0_i32_1 = arith.constant 0 : i32
    return %c0_i32, %c0_i32_0 : i32, i32
  }
  func.func @transform_3(%arg0: i32) -> (i32, i32) {
    %c0_i32 = arith.constant 0 : i32
    %c0_i32_0 = arith.constant 0 : i32
    %c0_i32_1 = arith.constant 0 : i32
    return %c0_i32, %c0_i32_0 : i32, i32
  }
  func.func @transform_4(%arg0: i32) -> (i32, i32) {
    %c0_i32 = arith.constant 0 : i32
    %c0_i32_0 = arith.constant 0 : i32
    %c0_i32_1 = arith.constant 0 : i32
    return %c0_i32, %c0_i32_0 : i32, i32
  }
  func.func @transform_5(%arg0: i32) -> (i32, i32) {
    %c0_i32 = arith.constant 0 : i32
    %c0_i32_0 = arith.constant 0 : i32
    %c0_i32_1 = arith.constant 0 : i32
    return %c0_i32, %c0_i32_0 : i32, i32
  }
  func.func @transform_6(%arg0: i32) -> (i32, i32) {
    %c0_i32 = arith.constant 0 : i32
    %c0_i32_0 = arith.constant 0 : i32
    %c0_i32_1 = arith.constant 0 : i32
    return %c0_i32, %c0_i32_0 : i32, i32
  }
  func.func @transform_7(%arg0: i32) -> (i32, i32) {
    %c0_i32 = arith.constant 0 : i32
    %c0_i32_0 = arith.constant 0 : i32
    %c0_i32_1 = arith.constant 0 : i32
    return %c0_i32, %c0_i32_0 : i32, i32
  }
  func.func @transform_8(%arg0: i32) -> (i32, i32) {
    %c0_i32 = arith.constant 0 : i32
    %c0_i32_0 = arith.constant 0 : i32
    %c0_i32_1 = arith.constant 0 : i32
    return %c0_i32, %c0_i32_0 : i32, i32
  }
  func.func @transform_9(%arg0: i32) -> (i32, i32) {
    %c0_i32 = arith.constant 0 : i32
    %c0_i32_0 = arith.constant 0 : i32
    return %arg0, %c0_i32 : i32, i32
  }
}

module attributes {stable_mosaic.version = 11 : i64} {
  func.func @generator_kernel(%arg0: i32, %arg1: memref<8x16xf32, #tpu.memory_space<vmem>>, %arg2: memref<16x32xf32, #tpu.memory_space<vmem>>, %arg3: memref<1x32xf32, #tpu.memory_space<vmem>>, %arg4: memref<32x64xf32, #tpu.memory_space<vmem>>, %arg5: memref<1x64xf32, #tpu.memory_space<vmem>>, %arg6: memref<64x128xf32, #tpu.memory_space<vmem>>, %arg7: memref<1x128xf32, #tpu.memory_space<vmem>>, %arg8: memref<128x128xf32, #tpu.memory_space<vmem>>, %arg9: memref<1x128xf32, #tpu.memory_space<vmem>>, %arg10: memref<8x24xf32, #tpu.memory_space<vmem>>) attributes {dimension_semantics = [#tpu.dimension_semantics<parallel>], iteration_bounds = array<i64: 1>, scalar_prefetch = 0 : i64, scratch_operands = 0 : i64, tpu.core_type = #tpu.core_type<tc>, window_params = [{transform_indices = @transform_0, window_bounds = array<i64: 8, 16>}, {pipeline_mode = #tpu.pipeline_mode<synchronous>, transform_indices = @transform_1, window_bounds = array<i64: 16, 32>}, {pipeline_mode = #tpu.pipeline_mode<synchronous>, transform_indices = @transform_2, window_bounds = array<i64: 1, 32>}, {pipeline_mode = #tpu.pipeline_mode<synchronous>, transform_indices = @transform_3, window_bounds = array<i64: 32, 64>}, {pipeline_mode = #tpu.pipeline_mode<synchronous>, transform_indices = @transform_4, window_bounds = array<i64: 1, 64>}, {pipeline_mode = #tpu.pipeline_mode<synchronous>, transform_indices = @transform_5, window_bounds = array<i64: 64, 128>}, {pipeline_mode = #tpu.pipeline_mode<synchronous>, transform_indices = @transform_6, window_bounds = array<i64: 1, 128>}, {pipeline_mode = #tpu.pipeline_mode<synchronous>, transform_indices = @transform_7, window_bounds = array<i64: 128, 128>}, {pipeline_mode = #tpu.pipeline_mode<synchronous>, transform_indices = @transform_8, window_bounds = array<i64: 1, 128>}, {transform_indices = @transform_9, window_bounds = array<i64: 8, 24>}]} {
    %c0 = arith.constant 0 : index
    %c0_0 = arith.constant 0 : index
    %0 = vector.load %arg1[%c0, %c0_0] : memref<8x16xf32, #tpu.memory_space<vmem>>, vector<8x16xf32>
    %c0_1 = arith.constant 0 : index
    %c0_2 = arith.constant 0 : index
    %1 = vector.load %arg2[%c0_1, %c0_2] : memref<16x32xf32, #tpu.memory_space<vmem>>, vector<16x32xf32>
    %cst = arith.constant dense<0.000000e+00> : vector<8x32xf32>
    %2 = tpu.matmul %0, %1, %cst {dimension_numbers = #tpu.dot_dimension_numbers<[1], [0], [0], [1], [0, 0, 1, 1], [], []>} : vector<8x16xf32>, vector<16x32xf32>, vector<8x32xf32> -> vector<8x32xf32>
    %c0_3 = arith.constant 0 : index
    %c0_4 = arith.constant 0 : index
    %3 = vector.load %arg3[%c0_3, %c0_4] : memref<1x32xf32, #tpu.memory_space<vmem>>, vector<1x32xf32>
    %4 = vector.broadcast %3 : vector<1x32xf32> to vector<8x32xf32>
    %5 = arith.addf %2, %4 : vector<8x32xf32>
    %cst_5 = arith.constant 0.000000e+00 : f32
    %6 = vector.broadcast %cst_5 : f32 to vector<8x32xf32>
    %7 = arith.maximumf %5, %6 : vector<8x32xf32>
    %c0_6 = arith.constant 0 : index
    %c0_7 = arith.constant 0 : index
    %8 = vector.load %arg4[%c0_6, %c0_7] : memref<32x64xf32, #tpu.memory_space<vmem>>, vector<32x64xf32>
    %cst_8 = arith.constant dense<0.000000e+00> : vector<8x64xf32>
    %9 = tpu.matmul %7, %8, %cst_8 {dimension_numbers = #tpu.dot_dimension_numbers<[1], [0], [0], [1], [0, 0, 1, 1], [], []>} : vector<8x32xf32>, vector<32x64xf32>, vector<8x64xf32> -> vector<8x64xf32>
    %c0_9 = arith.constant 0 : index
    %c0_10 = arith.constant 0 : index
    %10 = vector.load %arg5[%c0_9, %c0_10] : memref<1x64xf32, #tpu.memory_space<vmem>>, vector<1x64xf32>
    %11 = vector.broadcast %10 : vector<1x64xf32> to vector<8x64xf32>
    %12 = arith.addf %9, %11 : vector<8x64xf32>
    %cst_11 = arith.constant 0.000000e+00 : f32
    %13 = vector.broadcast %cst_11 : f32 to vector<8x64xf32>
    %14 = arith.maximumf %12, %13 : vector<8x64xf32>
    %c0_12 = arith.constant 0 : index
    %c0_13 = arith.constant 0 : index
    %15 = vector.load %arg6[%c0_12, %c0_13] : memref<64x128xf32, #tpu.memory_space<vmem>>, vector<64x128xf32>
    %cst_14 = arith.constant dense<0.000000e+00> : vector<8x128xf32>
    %16 = tpu.matmul %14, %15, %cst_14 {dimension_numbers = #tpu.dot_dimension_numbers<[1], [0], [0], [1], [0, 0, 1, 1], [], []>} : vector<8x64xf32>, vector<64x128xf32>, vector<8x128xf32> -> vector<8x128xf32>
    %c0_15 = arith.constant 0 : index
    %c0_16 = arith.constant 0 : index
    %17 = vector.load %arg7[%c0_15, %c0_16] : memref<1x128xf32, #tpu.memory_space<vmem>>, vector<1x128xf32>
    %18 = vector.broadcast %17 : vector<1x128xf32> to vector<8x128xf32>
    %19 = arith.addf %16, %18 : vector<8x128xf32>
    %cst_17 = arith.constant 0.000000e+00 : f32
    %20 = vector.broadcast %cst_17 : f32 to vector<8x128xf32>
    %21 = arith.maximumf %19, %20 : vector<8x128xf32>
    %c0_18 = arith.constant 0 : index
    %c0_19 = arith.constant 0 : index
    %22 = vector.load %arg8[%c0_18, %c0_19] : memref<128x128xf32, #tpu.memory_space<vmem>>, vector<128x128xf32>
    %cst_20 = arith.constant dense<0.000000e+00> : vector<8x128xf32>
    %23 = tpu.matmul %21, %22, %cst_20 {dimension_numbers = #tpu.dot_dimension_numbers<[1], [0], [0], [1], [0, 0, 1, 1], [], []>} : vector<8x128xf32>, vector<128x128xf32>, vector<8x128xf32> -> vector<8x128xf32>
    %c0_21 = arith.constant 0 : index
    %c0_22 = arith.constant 0 : index
    %24 = vector.load %arg9[%c0_21, %c0_22] : memref<1x128xf32, #tpu.memory_space<vmem>>, vector<1x128xf32>
    %25 = vector.broadcast %24 : vector<1x128xf32> to vector<8x128xf32>
    %26 = arith.addf %23, %25 : vector<8x128xf32>
    %27 = math.tanh %26 : vector<8x128xf32>
    %28 = vector.extract_strided_slice %27 {offsets = [0, 0], sizes = [8, 24], strides = [1, 1]} : vector<8x128xf32> to vector<8x24xf32>
    %c0_23 = arith.constant 0 : index
    %c0_24 = arith.constant 0 : index
    %29 = vector.load %arg10[%c0_23, %c0_24] : memref<8x24xf32, #tpu.memory_space<vmem>>, vector<8x24xf32>
    tpu.vector_store %arg10[%c0_23, %c0_24], %28 {strides = array<i32>} : memref<8x24xf32, #tpu.memory_space<vmem>>, vector<8x24xf32>,
    return
  }
  func.func @transform_0(%arg0: i32) -> (i32, i32) {
    %c0_i32 = arith.constant 0 : i32
    %c0_i32_0 = arith.constant 0 : i32
    return %arg0, %c0_i32 : i32, i32
  }
  func.func @transform_1(%arg0: i32) -> (i32, i32) {
    %c0_i32 = arith.constant 0 : i32
    %c0_i32_0 = arith.constant 0 : i32
    %c0_i32_1 = arith.constant 0 : i32
    return %c0_i32, %c0_i32_0 : i32, i32
  }
  func.func @transform_2(%arg0: i32) -> (i32, i32) {
    %c0_i32 = arith.constant 0 : i32
    %c0_i32_0 = arith.constant 0 : i32
    %c0_i32_1 = arith.constant 0 : i32
    return %c0_i32, %c0_i32_0 : i32, i32
  }
  func.func @transform_3(%arg0: i32) -> (i32, i32) {
    %c0_i32 = arith.constant 0 : i32
    %c0_i32_0 = arith.constant 0 : i32
    %c0_i32_1 = arith.constant 0 : i32
    return %c0_i32, %c0_i32_0 : i32, i32
  }
  func.func @transform_4(%arg0: i32) -> (i32, i32) {
    %c0_i32 = arith.constant 0 : i32
    %c0_i32_0 = arith.constant 0 : i32
    %c0_i32_1 = arith.constant 0 : i32
    return %c0_i32, %c0_i32_0 : i32, i32
  }
  func.func @transform_5(%arg0: i32) -> (i32, i32) {
    %c0_i32 = arith.constant 0 : i32
    %c0_i32_0 = arith.constant 0 : i32
    %c0_i32_1 = arith.constant 0 : i32
    return %c0_i32, %c0_i32_0 : i32, i32
  }
  func.func @transform_6(%arg0: i32) -> (i32, i32) {
    %c0_i32 = arith.constant 0 : i32
    %c0_i32_0 = arith.constant 0 : i32
    %c0_i32_1 = arith.constant 0 : i32
    return %c0_i32, %c0_i32_0 : i32, i32
  }
  func.func @transform_7(%arg0: i32) -> (i32, i32) {
    %c0_i32 = arith.constant 0 : i32
    %c0_i32_0 = arith.constant 0 : i32
    %c0_i32_1 = arith.constant 0 : i32
    return %c0_i32, %c0_i32_0 : i32, i32
  }
  func.func @transform_8(%arg0: i32) -> (i32, i32) {
    %c0_i32 = arith.constant 0 : i32
    %c0_i32_0 = arith.constant 0 : i32
    %c0_i32_1 = arith.constant 0 : i32
    return %c0_i32, %c0_i32_0 : i32, i32
  }
  func.func @transform_9(%arg0: i32) -> (i32, i32) {
    %c0_i32 = arith.constant 0 : i32
    %c0_i32_0 = arith.constant 0 : i32
    return %arg0, %c0_i32 : i32, i32
  }
}

</mosaic_0001>

<llo_original>
// kernel: tpu_custom_call.1
$region0: #{tpu_custom_call.1}
  #allocation0 [shape = 'u32[]', space=smem, size = 0x4, offset = 0x4, fixed_abs, tag = 'smem constant byte address 0x4 - core index']
  #allocation1 [shape = 'u32[144,128]{1,0:T(1,128)}', space=vmem, size = 0x12000, scoped, tag = 'internal scratch']
  %s0 = inlined_call_operand.hbm [shape: f32[8,16], index: 0, kind: input, shape index: {}]
  %s1 = inlined_call_operand.hbm [shape: f32[16,32], index: 1, kind: input, shape index: {}]
  %s2 = inlined_call_operand.vmem [shape: f32[1,32], index: 2, kind: input, shape index: {}]
  %s3 = inlined_call_operand.hbm [shape: f32[32,64], index: 3, kind: input, shape index: {}]
  %s4 = inlined_call_operand.vmem [shape: f32[1,64], index: 4, kind: input, shape index: {}]
  %s5 = inlined_call_operand.hbm [shape: f32[64,128], index: 5, kind: input, shape index: {}]
  %s6 = inlined_call_operand.vmem [shape: f32[1,128], index: 6, kind: input, shape index: {}]
  %s7 = inlined_call_operand.hbm [shape: f32[128,128], index: 7, kind: input, shape index: {}]
  %s8 = inlined_call_operand.vmem [shape: f32[1,128], index: 8, kind: input, shape index: {}]
  %s9 = inlined_call_operand.hbm [shape: f32[8,24], index: 9, kind: output, shape index: {}]
  %s10 = sld [smem:[#allocation0]]
  $region66: #{tpu_custom_call.1} parent=0
    _
  %s12 = ssub.s32 1, %s10
  %s13 = scalar_select 0, %s12, %s10
  $region1: #{tpu_custom_call.1} parent=0
    #allocation2 [shape = 'u8[4096]{0}', space=vmem, size = 0x1000, scoped, tag = 'input window, operand 0, single buffered']
    #allocation3 [shape = 's32[1]{0}', space=sflag, size = 0x4, scoped, tag = 'scoped memory for tpu_custom_call.1']
    #allocation4 [shape = 's32[1]{0}', space=sflag, size = 0x4, scoped, tag = 'scoped memory for tpu_custom_call.1']
    #allocation5 [shape = 'u8[8192]{0}', space=vmem, size = 0x2000, scoped, tag = 'input window, operand 1, single buffered']
    #allocation6 [shape = 's32[1]{0}', space=sflag, size = 0x4, scoped, tag = 'scoped memory for tpu_custom_call.1']
    #allocation7 [shape = 'u8[16384]{0}', space=vmem, size = 0x4000, scoped, tag = 'input window, operand 3, single buffered']
    #allocation8 [shape = 'u8[32768]{0}', space=vmem, size = 0x8000, scoped, tag = 'input window, operand 5, single buffered']
    #allocation9 [shape = 's32[1]{0}', space=sflag, size = 0x4, scoped, tag = 'scoped memory for tpu_custom_call.1']
    #allocation10 [shape = 'u8[65536]{0}', space=vmem, size = 0x10000, scoped, tag = 'input window, operand 7, single buffered']
    #allocation11 [shape = 'u8[4096]{0}', space=vmem, size = 0x1000, scoped, tag = 'output window, operand 0, single buffered']
    %14 = vsyncpa [#allocation3], 0
    %15 = vsyncpa [#allocation6], 0
    %16 = vsyncpa [#allocation9], 0
    %17 = vsyncpa [#allocation4], 0
    // Predicated region
    $region2: #{tpu_custom_call.1} parent=1 // pred_check
      _
    $region3: #{tpu_custom_call.1} parent=1 // pred_check_branch
      %19 = sbr.rel (0) target = $region5
    $region4: #{tpu_custom_call.1} parent=1 // pred_region
      %s21 = ssub.s32 128, 128
      %22 = vsyncadd [#allocation3], %s21
      %s24 = sshll.u32 [#allocation2], 4
      %s25 = int_to_ptr.vmem [resolvable:$true] %s24
      %27 = dma.hbm_to_vmem [thread:$0]  %s0, 128, %s25, [#allocation3]
    $region5: #{tpu_custom_call.1} parent=1 // pred_fallthru
      _
    // Predicated region
    $region6: #{tpu_custom_call.1} parent=1 // pred_check
      _
    $region7: #{tpu_custom_call.1} parent=1 // pred_check_branch
      %29 = sbr.rel (0) target = $region9
    $region8: #{tpu_custom_call.1} parent=1 // pred_region
      %s31 = ssub.s32 256, 256
      %32 = vsyncadd [#allocation6], %s31
      %s33 = sshll.u32 [#allocation5], 4
      %s34 = int_to_ptr.vmem [resolvable:$true] %s33
      %39 = dma.hbm_to_vmem [thread:$0]  %s1, 256, %s34, [#allocation6], 128, 128, 8
    $region9: #{tpu_custom_call.1} parent=1 // pred_fallthru
      _
    // Predicated region
    $region10: #{tpu_custom_call.1} parent=1 // pred_check
      _
    $region11: #{tpu_custom_call.1} parent=1 // pred_check_branch
      %41 = sbr.rel (0) target = $region13
    $region12: #{tpu_custom_call.1} parent=1 // pred_region
      _
    $region13: #{tpu_custom_call.1} parent=1 // pred_fallthru
      _
    // Predicated region
    $region14: #{tpu_custom_call.1} parent=1 // pred_check
      _
    $region15: #{tpu_custom_call.1} parent=1 // pred_check_branch
      %43 = sbr.rel (0) target = $region17
    $region16: #{tpu_custom_call.1} parent=1 // pred_region
      %s45 = ssub.s32 512, 512
      %46 = vsyncadd [#allocation6], %s45
      %s47 = sshll.u32 [#allocation7], 4
      %s48 = int_to_ptr.vmem [resolvable:$true] %s47
      %53 = dma.hbm_to_vmem [thread:$0]  %s3, 512, %s48, [#allocation6], 128, 128, 8
    $region17: #{tpu_custom_call.1} parent=1 // pred_fallthru
      _
    // Predicated region
    $region18: #{tpu_custom_call.1} parent=1 // pred_check
      _
    $region19: #{tpu_custom_call.1} parent=1 // pred_check_branch
      %55 = sbr.rel (0) target = $region21
    $region20: #{tpu_custom_call.1} parent=1 // pred_region
      _
    $region21: #{tpu_custom_call.1} parent=1 // pred_fallthru
      _
    // Predicated region
    $region22: #{tpu_custom_call.1} parent=1 // pred_check
      _
    $region23: #{tpu_custom_call.1} parent=1 // pred_check_branch
      %57 = sbr.rel (0) target = $region25
    $region24: #{tpu_custom_call.1} parent=1 // pred_region
      %s59 = ssub.s32 1024, 1024
      %60 = vsyncadd [#allocation9], %s59
      %s61 = sshll.u32 [#allocation8], 4
      %s62 = int_to_ptr.vmem [resolvable:$true] %s61
      %67 = dma.hbm_to_vmem [thread:$0]  %s5, 1024, %s62, [#allocation9], 128, 128, 8
    $region25: #{tpu_custom_call.1} parent=1 // pred_fallthru
      _
    // Predicated region
    $region26: #{tpu_custom_call.1} parent=1 // pred_check
      _
    $region27: #{tpu_custom_call.1} parent=1 // pred_check_branch
      %69 = sbr.rel (0) target = $region29
    $region28: #{tpu_custom_call.1} parent=1 // pred_region
      _
    $region29: #{tpu_custom_call.1} parent=1 // pred_fallthru
      _
    // Predicated region
    $region30: #{tpu_custom_call.1} parent=1 // pred_check
      _
    $region31: #{tpu_custom_call.1} parent=1 // pred_check_branch
      %71 = sbr.rel (0) target = $region33
    $region32: #{tpu_custom_call.1} parent=1 // pred_region
      %s73 = ssub.s32 2048, 2048
      %74 = vsyncadd [#allocation9], %s73
      %s75 = sshll.u32 [#allocation10], 4
      %s76 = int_to_ptr.vmem [resolvable:$true] %s75
      %81 = dma.hbm_to_vmem [thread:$0]  %s7, 2048, %s76, [#allocation9], 128, 128, 8
    $region33: #{tpu_custom_call.1} parent=1 // pred_fallthru
      _
    // Predicated region
    $region34: #{tpu_custom_call.1} parent=1 // pred_check
      _
    $region35: #{tpu_custom_call.1} parent=1 // pred_check_branch
      %83 = sbr.rel (0) target = $region37
    $region36: #{tpu_custom_call.1} parent=1 // pred_region
      _
    $region37: #{tpu_custom_call.1} parent=1 // pred_fallthru
      _
    // Predicated region
    $region38: #{tpu_custom_call.1} parent=1 // pred_check
      _
    $region39: #{tpu_custom_call.1} parent=1 // pred_check_branch
      %85 = sbr.rel (0) target = $region41
    $region40: #{tpu_custom_call.1} parent=1 // pred_region
      %86 = dma.done [#allocation3], 128
    $region41: #{tpu_custom_call.1} parent=1 // pred_fallthru
      _
    // Predicated region
    $region42: #{tpu_custom_call.1} parent=1 // pred_check
      _
    $region43: #{tpu_custom_call.1} parent=1 // pred_check_branch
      %88 = sbr.rel (0) target = $region45
    $region44: #{tpu_custom_call.1} parent=1 // pred_region
      %89 = dma.done [#allocation6], 256
    $region45: #{tpu_custom_call.1} parent=1 // pred_fallthru
      _
    // Predicated region
    $region46: #{tpu_custom_call.1} parent=1 // pred_check
      _
    $region47: #{tpu_custom_call.1} parent=1 // pred_check_branch
      %91 = sbr.rel (0) target = $region49
    $region48: #{tpu_custom_call.1} parent=1 // pred_region
      %92 = dma.done [#allocation6], 512
    $region49: #{tpu_custom_call.1} parent=1 // pred_fallthru
      _
    // Predicated region
    $region50: #{tpu_custom_call.1} parent=1 // pred_check
      _
    $region51: #{tpu_custom_call.1} parent=1 // pred_check_branch
      %94 = sbr.rel (0) target = $region53
    $region52: #{tpu_custom_call.1} parent=1 // pred_region
      %95 = dma.done [#allocation9], 1024
    $region53: #{tpu_custom_call.1} parent=1 // pred_fallthru
      _
    // Predicated region
    $region54: #{tpu_custom_call.1} parent=1 // pred_check
      _
    $region55: #{tpu_custom_call.1} parent=1 // pred_check_branch
      %97 = sbr.rel (0) target = $region57
    $region56: #{tpu_custom_call.1} parent=1 // pred_region
      %98 = dma.done [#allocation9], 2048
    $region57: #{tpu_custom_call.1} parent=1 // pred_fallthru
      _
    %v99 = vld [vmem:[#allocation2] sm:$0xff]
    %v100 = vld [vmem:[#allocation5] sm:$0xff]
    %v101 = vld [vmem:[#allocation5 + $0x8] sm:$0xff]
    %v102 = vld [vmem:[%s2] sm:$0x1]
    %v104 = vlaneseq
    %v105 = vshrl.u32 %v104, 7
    %v106 = vsub.s32 0, %v105
    %v107 = vrot.slane %v102, %v106
    %vm109 = vcmask 130048
    %v111 = vsel %vm109, %v99, 0
    %113 = vmatprep.subr.mxu0 0.0
    %114 = vmatpush1.msra.mxu0 %v100
    %115 = vmatprep.subr.mxu0 0.0
    %116 = vmatpush1.msra.mxu0 %v101
    %117 = vmatprep.subr.mxu0 0.0
    %118 = vmatpush1.msra.mxu0 0.0
    %119 = vmatprep.subr.mxu0 0.0
    %120 = vmatpush1.msra.mxu0 0.0
    %121 = vmatprep.subr.mxu0 0.0
    %122 = vmatpush1.msra.mxu0 0.0
    %123 = vmatprep.subr.mxu0 0.0
    %124 = vmatpush1.msra.mxu0 0.0
    %125 = vmatprep.subr.mxu0 0.0
    %126 = vmatpush1.msra.mxu0 0.0
    %127 = vmatprep.subr.mxu0 0.0
    %128 = vmatpush1.msra.mxu0 0.0
    %129 = vmatprep.subr.mxu0 0.0
    %130 = vmatpush1.msra.mxu0 0.0
    %131 = vmatprep.subr.mxu0 0.0
    %132 = vmatpush1.msra.mxu0 0.0
    %133 = vmatprep.subr.mxu0 0.0
    %134 = vmatpush1.msra.mxu0 0.0
    %135 = vmatprep.subr.mxu0 0.0
    %136 = vmatpush1.msra.mxu0 0.0
    %137 = vmatprep.subr.mxu0 0.0
    %138 = vmatpush1.msra.mxu0 0.0
    %139 = vmatprep.subr.mxu0 0.0
    %140 = vmatpush1.msra.mxu0 0.0
    %141 = vmatprep.subr.mxu0 0.0
    %142 = vmatpush1.msra.mxu0 0.0
    %143 = vmatprep.subr.mxu0 0.0
    %144 = vmatpush1.msra.mxu0 0.0
    %145 = vmatprep.subr.mxu0 0.0
    %146 = vmatpush1.msra.mxu0 0.0
    %147 = vmatprep.subr.mxu0 0.0
    %148 = vmatpush1.msra.mxu0 0.0
    %149 = vmatprep.subr.mxu0 0.0
    %150 = vmatpush1.msra.mxu0 0.0
    %151 = vmatprep.subr.mxu0 0.0
    %152 = vmatpush1.msra.mxu0 0.0
    %153 = vmatprep.subr.mxu0 0.0
    %154 = vmatpush1.msra.mxu0 0.0
    %155 = vmatprep.subr.mxu0 0.0
    %156 = vmatpush1.msra.mxu0 0.0
    %157 = vmatprep.subr.mxu0 0.0
    %158 = vmatpush1.msra.mxu0 0.0
    %159 = vmatprep.subr.mxu0 0.0
    %160 = vmatpush1.msra.mxu0 0.0
    %161 = vmatprep.subr.mxu0 0.0
    %162 = vmatpush1.msra.mxu0 0.0
    %163 = vmatprep.subr.mxu0 0.0
    %164 = vmatpush1.msra.mxu0 0.0
    %165 = vmatprep.subr.mxu0 0.0
    %166 = vmatpush1.msra.mxu0 0.0
    %167 = vmatprep.subr.mxu0 0.0
    %168 = vmatpush1.msra.mxu0 0.0
    %169 = vmatprep.subr.mxu0 0.0
    %170 = vmatpush1.msra.mxu0 0.0
    %171 = vmatprep.subr.mxu0 0.0
    %172 = vmatpush1.msra.mxu0 0.0
    %173 = vmatprep.subr.mxu0 0.0
    %174 = vmatpush1.msra.mxu0 0.0
    %175 = vmatprep.subr.mxu0 0.0
    %176 = vmatpush1.msra.mxu0 0.0
    %177 = vmatprep.mubr.f32.mxu0 0.0
    %178 = vmatmul.mubr.f32.gmra.mrb[0].mxu0 %v111
    %v179 = vpop.f32.mrb[0].mxu0
    %v180 = vadd.f32 %v107, %v179
    %v181 = vpop.f32.mrb[0].mxu0
    %182 = vdwg.mxu0
    %v183 = vmax.f32 %v180, 0.0
    %v184 = vld [vmem:[#allocation7] sm:$0xff]
    %v185 = vld [vmem:[#allocation7 + $0x8] sm:$0xff]
    %v186 = vld [vmem:[#allocation7 + $0x10] sm:$0xff]
    %v187 = vld [vmem:[#allocation7 + $0x18] sm:$0xff]
    %v188 = vld [vmem:[%s4] sm:$0x1]
    %v190 = vlaneseq
    %v191 = vshrl.u32 %v190, 7
    %v192 = vsub.s32 0, %v191
    %v193 = vrot.slane %v188, %v192
    %vm195 = vcmask 261120
    %v197 = vsel %vm195, %v183, 0
    %199 = vmatprep.subr.mxu0 0.0
    %200 = vmatpush1.msra.mxu0 %v184
    %201 = vmatprep.subr.mxu0 0.0
    %202 = vmatpush1.msra.mxu0 %v185
    %203 = vmatprep.subr.mxu0 0.0
    %204 = vmatpush1.msra.mxu0 %v186
    %205 = vmatprep.subr.mxu0 0.0
    %206 = vmatpush1.msra.mxu0 %v187
    %207 = vmatprep.subr.mxu0 0.0
    %208 = vmatpush1.msra.mxu0 0.0
    %209 = vmatprep.subr.mxu0 0.0
    %210 = vmatpush1.msra.mxu0 0.0
    %211 = vmatprep.subr.mxu0 0.0
    %212 = vmatpush1.msra.mxu0 0.0
    %213 = vmatprep.subr.mxu0 0.0
    %214 = vmatpush1.msra.mxu0 0.0
    %215 = vmatprep.subr.mxu0 0.0
    %216 = vmatpush1.msra.mxu0 0.0
    %217 = vmatprep.subr.mxu0 0.0
    %218 = vmatpush1.msra.mxu0 0.0
    %219 = vmatprep.subr.mxu0 0.0
    %220 = vmatpush1.msra.mxu0 0.0
    %221 = vmatprep.subr.mxu0 0.0
    %222 = vmatpush1.msra.mxu0 0.0
    %223 = vmatprep.subr.mxu0 0.0
    %224 = vmatpush1.msra.mxu0 0.0
    %225 = vmatprep.subr.mxu0 0.0
    %226 = vmatpush1.msra.mxu0 0.0
    %227 = vmatprep.subr.mxu0 0.0
    %228 = vmatpush1.msra.mxu0 0.0
    %229 = vmatprep.subr.mxu0 0.0
    %230 = vmatpush1.msra.mxu0 0.0
    %231 = vmatprep.subr.mxu0 0.0
    %232 = vmatpush1.msra.mxu0 0.0
    %233 = vmatprep.subr.mxu0 0.0
    %234 = vmatpush1.msra.mxu0 0.0
    %235 = vmatprep.subr.mxu0 0.0
    %236 = vmatpush1.msra.mxu0 0.0
    %237 = vmatprep.subr.mxu0 0.0
    %238 = vmatpush1.msra.mxu0 0.0
    %239 = vmatprep.subr.mxu0 0.0
    %240 = vmatpush1.msra.mxu0 0.0
    %241 = vmatprep.subr.mxu0 0.0
    %242 = vmatpush1.msra.mxu0 0.0
    %243 = vmatprep.subr.mxu0 0.0
    %244 = vmatpush1.msra.mxu0 0.0
    %245 = vmatprep.subr.mxu0 0.0
    %246 = vmatpush1.msra.mxu0 0.0
    %247 = vmatprep.subr.mxu0 0.0
    %248 = vmatpush1.msra.mxu0 0.0
    %249 = vmatprep.subr.mxu0 0.0
    %250 = vmatpush1.msra.mxu0 0.0
    %251 = vmatprep.subr.mxu0 0.0
    %252 = vmatpush1.msra.mxu0 0.0
    %253 = vmatprep.subr.mxu0 0.0
    %254 = vmatpush1.msra.mxu0 0.0
    %255 = vmatprep.subr.mxu0 0.0
    %256 = vmatpush1.msra.mxu0 0.0
    %257 = vmatprep.subr.mxu0 0.0
    %258 = vmatpush1.msra.mxu0 0.0
    %259 = vmatprep.subr.mxu0 0.0
    %260 = vmatpush1.msra.mxu0 0.0
    %261 = vmatprep.subr.mxu0 0.0
    %262 = vmatpush1.msra.mxu0 0.0
    %263 = vmatprep.mubr.f32.mxu0 0.0
    %264 = vmatmul.mubr.f32.gmra.mrb[0].mxu0 %v197
    %v265 = vpop.f32.mrb[0].mxu0
    %v266 = vadd.f32 %v193, %v265
    %v267 = vpop.f32.mrb[0].mxu0
    %268 = vdwg.mxu0
    %v269 = vmax.f32 %v266, 0.0
    %v270 = vld [vmem:[#allocation8] sm:$0xff]
    %v271 = vld [vmem:[#allocation8 + $0x8] sm:$0xff]
    %v272 = vld [vmem:[#allocation8 + $0x10] sm:$0xff]
    %v273 = vld [vmem:[#allocation8 + $0x18] sm:$0xff]
    %v274 = vld [vmem:[#allocation8 + $0x20] sm:$0xff]
    %v275 = vld [vmem:[#allocation8 + $0x28] sm:$0xff]
    %v276 = vld [vmem:[#allocation8 + $0x30] sm:$0xff]
    %v277 = vld [vmem:[#allocation8 + $0x38] sm:$0xff]
    %v278 = vld [vmem:[%s6] sm:$0x1]
    %v280 = vlaneseq
    %v281 = vshrl.u32 %v280, 7
    %v282 = vsub.s32 0, %v281
    %v283 = vrot.slane %v278, %v282
    %vm285 = vcmask 523264
    %v287 = vsel %vm285, %v269, 0
    %289 = vmatprep.subr.mxu0 0.0
    %290 = vmatpush1.msra.mxu0 %v270
    %291 = vmatprep.subr.mxu0 0.0
    %292 = vmatpush1.msra.mxu0 %v271
    %293 = vmatprep.subr.mxu0 0.0
    %294 = vmatpush1.msra.mxu0 %v272
    %295 = vmatprep.subr.mxu0 0.0
    %296 = vmatpush1.msra.mxu0 %v273
    %297 = vmatprep.subr.mxu0 0.0
    %298 = vmatpush1.msra.mxu0 %v274
    %299 = vmatprep.subr.mxu0 0.0
    %300 = vmatpush1.msra.mxu0 %v275
    %301 = vmatprep.subr.mxu0 0.0
    %302 = vmatpush1.msra.mxu0 %v276
    %303 = vmatprep.subr.mxu0 0.0
    %304 = vmatpush1.msra.mxu0 %v277
    %305 = vmatprep.subr.mxu0 0.0
    %306 = vmatpush1.msra.mxu0 0.0
    %307 = vmatprep.subr.mxu0 0.0
    %308 = vmatpush1.msra.mxu0 0.0
    %309 = vmatprep.subr.mxu0 0.0
    %310 = vmatpush1.msra.mxu0 0.0
    %311 = vmatprep.subr.mxu0 0.0
    %312 = vmatpush1.msra.mxu0 0.0
    %313 = vmatprep.subr.mxu0 0.0
    %314 = vmatpush1.msra.mxu0 0.0
    %315 = vmatprep.subr.mxu0 0.0
    %316 = vmatpush1.msra.mxu0 0.0
    %317 = vmatprep.subr.mxu0 0.0
    %318 = vmatpush1.msra.mxu0 0.0
    %319 = vmatprep.subr.mxu0 0.0
    %320 = vmatpush1.msra.mxu0 0.0
    %321 = vmatprep.subr.mxu0 0.0
    %322 = vmatpush1.msra.mxu0 0.0
    %323 = vmatprep.subr.mxu0 0.0
    %324 = vmatpush1.msra.mxu0 0.0
    %325 = vmatprep.subr.mxu0 0.0
    %326 = vmatpush1.msra.mxu0 0.0
    %327 = vmatprep.subr.mxu0 0.0
    %328 = vmatpush1.msra.mxu0 0.0
    %329 = vmatprep.subr.mxu0 0.0
    %330 = vmatpush1.msra.mxu0 0.0
    %331 = vmatprep.subr.mxu0 0.0
    %332 = vmatpush1.msra.mxu0 0.0
    %333 = vmatprep.subr.mxu0 0.0
    %334 = vmatpush1.msra.mxu0 0.0
    %335 = vmatprep.subr.mxu0 0.0
    %336 = vmatpush1.msra.mxu0 0.0
    %337 = vmatprep.subr.mxu0 0.0
    %338 = vmatpush1.msra.mxu0 0.0
    %339 = vmatprep.subr.mxu0 0.0
    %340 = vmatpush1.msra.mxu0 0.0
    %341 = vmatprep.subr.mxu0 0.0
    %342 = vmatpush1.msra.mxu0 0.0
    %343 = vmatprep.subr.mxu0 0.0
    %344 = vmatpush1.msra.mxu0 0.0
    %345 = vmatprep.subr.mxu0 0.0
    %346 = vmatpush1.msra.mxu0 0.0
    %347 = vmatprep.subr.mxu0 0.0
    %348 = vmatpush1.msra.mxu0 0.0
    %349 = vmatprep.subr.mxu0 0.0
    %350 = vmatpush1.msra.mxu0 0.0
    %351 = vmatprep.subr.mxu0 0.0
    %352 = vmatpush1.msra.mxu0 0.0
    %353 = vmatprep.mubr.f32.mxu0 0.0
    %354 = vmatmul.mubr.f32.gmra.mrb[0].mxu0 %v287
    %v355 = vpop.f32.mrb[0].mxu0
    %v356 = vadd.f32 %v283, %v355
    %v357 = vpop.f32.mrb[0].mxu0
    %358 = vdwg.mxu0
    %v359 = vmax.f32 %v356, 0.0
    %v360 = vld [vmem:[#allocation10] sm:$0xff]
    %v361 = vld [vmem:[#allocation10 + $0x8] sm:$0xff]
    %v362 = vld [vmem:[#allocation10 + $0x10] sm:$0xff]
    %v363 = vld [vmem:[#allocation10 + $0x18] sm:$0xff]
    %v364 = vld [vmem:[#allocation10 + $0x20] sm:$0xff]
    %v365 = vld [vmem:[#allocation10 + $0x28] sm:$0xff]
    %v366 = vld [vmem:[#allocation10 + $0x30] sm:$0xff]
    %v367 = vld [vmem:[#allocation10 + $0x38] sm:$0xff]
    %v368 = vld [vmem:[#allocation10 + $0x40] sm:$0xff]
    %v369 = vld [vmem:[#allocation10 + $0x48] sm:$0xff]
    %v370 = vld [vmem:[#allocation10 + $0x50] sm:$0xff]
    %v371 = vld [vmem:[#allocation10 + $0x58] sm:$0xff]
    %v372 = vld [vmem:[#allocation10 + $0x60] sm:$0xff]
    %v373 = vld [vmem:[#allocation10 + $0x68] sm:$0xff]
    %v374 = vld [vmem:[#allocation10 + $0x70] sm:$0xff]
    %v375 = vld [vmem:[#allocation10 + $0x78] sm:$0xff]
    %v376 = vld [vmem:[%s8] sm:$0x1]
    %v378 = vlaneseq
    %v379 = vshrl.u32 %v378, 7
    %v380 = vsub.s32 0, %v379
    %v381 = vrot.slane %v376, %v380
    %383 = vmatprep.subr.mxu0 0.0
    %384 = vmatpush1.msra.mxu0 %v360
    %385 = vmatprep.subr.mxu0 0.0
    %386 = vmatpush1.msra.mxu0 %v361
    %387 = vmatprep.subr.mxu0 0.0
    %388 = vmatpush1.msra.mxu0 %v362
    %389 = vmatprep.subr.mxu0 0.0
    %390 = vmatpush1.msra.mxu0 %v363
    %391 = vmatprep.subr.mxu0 0.0
    %392 = vmatpush1.msra.mxu0 %v364
    %393 = vmatprep.subr.mxu0 0.0
    %394 = vmatpush1.msra.mxu0 %v365
    %395 = vmatprep.subr.mxu0 0.0
    %396 = vmatpush1.msra.mxu0 %v366
    %397 = vmatprep.subr.mxu0 0.0
    %398 = vmatpush1.msra.mxu0 %v367
    %399 = vmatprep.subr.mxu0 0.0
    %400 = vmatpush1.msra.mxu0 %v368
    %401 = vmatprep.subr.mxu0 0.0
    %402 = vmatpush1.msra.mxu0 %v369
    %403 = vmatprep.subr.mxu0 0.0
    %404 = vmatpush1.msra.mxu0 %v370
    %405 = vmatprep.subr.mxu0 0.0
    %406 = vmatpush1.msra.mxu0 %v371
    %407 = vmatprep.subr.mxu0 0.0
    %408 = vmatpush1.msra.mxu0 %v372
    %409 = vmatprep.subr.mxu0 0.0
    %410 = vmatpush1.msra.mxu0 %v373
    %411 = vmatprep.subr.mxu0 0.0
    %412 = vmatpush1.msra.mxu0 %v374
    %413 = vmatprep.subr.mxu0 0.0
    %414 = vmatpush1.msra.mxu0 %v375
    %415 = vmatprep.subr.mxu0 0.0
    %416 = vmatpush1.msra.mxu0 0.0
    %417 = vmatprep.subr.mxu0 0.0
    %418 = vmatpush1.msra.mxu0 0.0
    %419 = vmatprep.subr.mxu0 0.0
    %420 = vmatpush1.msra.mxu0 0.0
    %421 = vmatprep.subr.mxu0 0.0
    %422 = vmatpush1.msra.mxu0 0.0
    %423 = vmatprep.subr.mxu0 0.0
    %424 = vmatpush1.msra.mxu0 0.0
    %425 = vmatprep.subr.mxu0 0.0
    %426 = vmatpush1.msra.mxu0 0.0
    %427 = vmatprep.subr.mxu0 0.0
    %428 = vmatpush1.msra.mxu0 0.0
    %429 = vmatprep.subr.mxu0 0.0
    %430 = vmatpush1.msra.mxu0 0.0
    %431 = vmatprep.subr.mxu0 0.0
    %432 = vmatpush1.msra.mxu0 0.0
    %433 = vmatprep.subr.mxu0 0.0
    %434 = vmatpush1.msra.mxu0 0.0
    %435 = vmatprep.subr.mxu0 0.0
    %436 = vmatpush1.msra.mxu0 0.0
    %437 = vmatprep.subr.mxu0 0.0
    %438 = vmatpush1.msra.mxu0 0.0
    %439 = vmatprep.subr.mxu0 0.0
    %440 = vmatpush1.msra.mxu0 0.0
    %441 = vmatprep.subr.mxu0 0.0
    %442 = vmatpush1.msra.mxu0 0.0
    %443 = vmatprep.subr.mxu0 0.0
    %444 = vmatpush1.msra.mxu0 0.0
    %445 = vmatprep.subr.mxu0 0.0
    %446 = vmatpush1.msra.mxu0 0.0
    %447 = vmatprep.mubr.f32.mxu0 0.0
    %448 = vmatmul.mubr.f32.gmra.mrb[0].mxu0 %v359
    %v449 = vpop.f32.mrb[0].mxu0
    %v450 = vadd.f32 %v381, %v449
    %v451 = vpop.f32.mrb[0].mxu0
    %452 = vdwg.mxu0
    %v453 = vtanh.pop %v450
    %vm454 = vcmask 195584
    %455 = vst.msk [vmem:[#allocation11] sm:$0xff] %vm454, %v453
    // Predicated region
    $region58: #{tpu_custom_call.1} parent=1 // pred_check
      _
    $region59: #{tpu_custom_call.1} parent=1 // pred_check_branch
      %457 = sbr.rel (0) target = $region61
    $region60: #{tpu_custom_call.1} parent=1 // pred_region
      %s459 = ssub.s32 128, 128
      %460 = vsyncadd [#allocation4], %s459
      %s462 = sshll.u32 [#allocation11], 4
      %s463 = int_to_ptr.vmem [resolvable:$true] %s462
      %465 = dma.vmem_to_hbm [thread:$0]  %s463, 128, %s9, [#allocation4]
    $region61: #{tpu_custom_call.1} parent=1 // pred_fallthru
      _
    // Predicated region
    $region62: #{tpu_custom_call.1} parent=1 // pred_check
      _
    $region63: #{tpu_custom_call.1} parent=1 // pred_check_branch
      %467 = sbr.rel (0) target = $region65
    $region64: #{tpu_custom_call.1} parent=1 // pred_region
      %468 = dma.done [#allocation4], 128
    $region65: #{tpu_custom_call.1} parent=1 // pred_fallthru
      _
    %469 = vsyncpa [#allocation3], 1
    %470 = vsyncpa [#allocation6], 1
    %471 = vsyncpa [#allocation9], 1
    %472 = vsyncpa [#allocation4], 1

// kernel: tpu_custom_call.1
$region0: #{tpu_custom_call.1}
  #allocation0 [shape = 'u32[]', space=smem, size = 0x4, offset = 0x4, fixed_abs, tag = 'smem constant byte address 0x4 - core index']
  #allocation1 [shape = 'u32[144,128]{1,0:T(1,128)}', space=vmem, size = 0x12000, scoped, tag = 'internal scratch']
  %s0 = inlined_call_operand.hbm [shape: f32[8,16], index: 0, kind: input, shape index: {}]
  %s1 = inlined_call_operand.hbm [shape: f32[16,32], index: 1, kind: input, shape index: {}]
  %s2 = inlined_call_operand.vmem [shape: f32[1,32], index: 2, kind: input, shape index: {}]
  %s3 = inlined_call_operand.hbm [shape: f32[32,64], index: 3, kind: input, shape index: {}]
  %s4 = inlined_call_operand.vmem [shape: f32[1,64], index: 4, kind: input, shape index: {}]
  %s5 = inlined_call_operand.hbm [shape: f32[64,128], index: 5, kind: input, shape index: {}]
  %s6 = inlined_call_operand.vmem [shape: f32[1,128], index: 6, kind: input, shape index: {}]
  %s7 = inlined_call_operand.hbm [shape: f32[128,128], index: 7, kind: input, shape index: {}]
  %s8 = inlined_call_operand.vmem [shape: f32[1,128], index: 8, kind: input, shape index: {}]
  %s9 = inlined_call_operand.hbm [shape: f32[8,24], index: 9, kind: output, shape index: {}]
  %s10 = sld [smem:[#allocation0]]
  $region66: #{tpu_custom_call.1} parent=0
    _
  %s12 = ssub.s32 1, %s10
  %s13 = scalar_select 0, %s12, %s10
  $region1: #{tpu_custom_call.1} parent=0
    #allocation2 [shape = 'u8[4096]{0}', space=vmem, size = 0x1000, scoped, tag = 'input window, operand 0, single buffered']
    #allocation3 [shape = 's32[1]{0}', space=sflag, size = 0x4, scoped, tag = 'scoped memory for tpu_custom_call.1']
    #allocation4 [shape = 's32[1]{0}', space=sflag, size = 0x4, scoped, tag = 'scoped memory for tpu_custom_call.1']
    #allocation5 [shape = 'u8[8192]{0}', space=vmem, size = 0x2000, scoped, tag = 'input window, operand 1, single buffered']
    #allocation6 [shape = 's32[1]{0}', space=sflag, size = 0x4, scoped, tag = 'scoped memory for tpu_custom_call.1']
    #allocation7 [shape = 'u8[16384]{0}', space=vmem, size = 0x4000, scoped, tag = 'input window, operand 3, single buffered']
    #allocation8 [shape = 'u8[32768]{0}', space=vmem, size = 0x8000, scoped, tag = 'input window, operand 5, single buffered']
    #allocation9 [shape = 's32[1]{0}', space=sflag, size = 0x4, scoped, tag = 'scoped memory for tpu_custom_call.1']
    #allocation10 [shape = 'u8[65536]{0}', space=vmem, size = 0x10000, scoped, tag = 'input window, operand 7, single buffered']
    #allocation11 [shape = 'u8[4096]{0}', space=vmem, size = 0x1000, scoped, tag = 'output window, operand 0, single buffered']
    %14 = vsyncpa [#allocation3], 0
    %15 = vsyncpa [#allocation6], 0
    %16 = vsyncpa [#allocation9], 0
    %17 = vsyncpa [#allocation4], 0
    // Predicated region
    $region2: #{tpu_custom_call.1} parent=1 // pred_check
      _
    $region3: #{tpu_custom_call.1} parent=1 // pred_check_branch
      %19 = sbr.rel (0) target = $region5
    $region4: #{tpu_custom_call.1} parent=1 // pred_region
      %s21 = ssub.s32 128, 128
      %22 = vsyncadd [#allocation3], %s21
      %s24 = sshll.u32 [#allocation2], 4
      %s25 = int_to_ptr.vmem [resolvable:$true] %s24
      %27 = dma.hbm_to_vmem [thread:$0]  %s0, 128, %s25, [#allocation3]
    $region5: #{tpu_custom_call.1} parent=1 // pred_fallthru
      _
    // Predicated region
    $region6: #{tpu_custom_call.1} parent=1 // pred_check
      _
    $region7: #{tpu_custom_call.1} parent=1 // pred_check_branch
      %29 = sbr.rel (0) target = $region9
    $region8: #{tpu_custom_call.1} parent=1 // pred_region
      %s31 = ssub.s32 256, 256
      %32 = vsyncadd [#allocation6], %s31
      %s33 = sshll.u32 [#allocation5], 4
      %s34 = int_to_ptr.vmem [resolvable:$true] %s33
      %39 = dma.hbm_to_vmem [thread:$0]  %s1, 256, %s34, [#allocation6], 128, 128, 8
    $region9: #{tpu_custom_call.1} parent=1 // pred_fallthru
      _
    // Predicated region
    $region10: #{tpu_custom_call.1} parent=1 // pred_check
      _
    $region11: #{tpu_custom_call.1} parent=1 // pred_check_branch
      %41 = sbr.rel (0) target = $region13
    $region12: #{tpu_custom_call.1} parent=1 // pred_region
      _
    $region13: #{tpu_custom_call.1} parent=1 // pred_fallthru
      _
    // Predicated region
    $region14: #{tpu_custom_call.1} parent=1 // pred_check
      _
    $region15: #{tpu_custom_call.1} parent=1 // pred_check_branch
      %43 = sbr.rel (0) target = $region17
    $region16: #{tpu_custom_call.1} parent=1 // pred_region
      %s45 = ssub.s32 512, 512
      %46 = vsyncadd [#allocation6], %s45
      %s47 = sshll.u32 [#allocation7], 4
      %s48 = int_to_ptr.vmem [resolvable:$true] %s47
      %53 = dma.hbm_to_vmem [thread:$0]  %s3, 512, %s48, [#allocation6], 128, 128, 8
    $region17: #{tpu_custom_call.1} parent=1 // pred_fallthru
      _
    // Predicated region
    $region18: #{tpu_custom_call.1} parent=1 // pred_check
      _
    $region19: #{tpu_custom_call.1} parent=1 // pred_check_branch
      %55 = sbr.rel (0) target = $region21
    $region20: #{tpu_custom_call.1} parent=1 // pred_region
      _
    $region21: #{tpu_custom_call.1} parent=1 // pred_fallthru
      _
    // Predicated region
    $region22: #{tpu_custom_call.1} parent=1 // pred_check
      _
    $region23: #{tpu_custom_call.1} parent=1 // pred_check_branch
      %57 = sbr.rel (0) target = $region25
    $region24: #{tpu_custom_call.1} parent=1 // pred_region
      %s59 = ssub.s32 1024, 1024
      %60 = vsyncadd [#allocation9], %s59
      %s61 = sshll.u32 [#allocation8], 4
      %s62 = int_to_ptr.vmem [resolvable:$true] %s61
      %67 = dma.hbm_to_vmem [thread:$0]  %s5, 1024, %s62, [#allocation9], 128, 128, 8
    $region25: #{tpu_custom_call.1} parent=1 // pred_fallthru
      _
    // Predicated region
    $region26: #{tpu_custom_call.1} parent=1 // pred_check
      _
    $region27: #{tpu_custom_call.1} parent=1 // pred_check_branch
      %69 = sbr.rel (0) target = $region29
    $region28: #{tpu_custom_call.1} parent=1 // pred_region
      _
    $region29: #{tpu_custom_call.1} parent=1 // pred_fallthru
      _
    // Predicated region
    $region30: #{tpu_custom_call.1} parent=1 // pred_check
      _
    $region31: #{tpu_custom_call.1} parent=1 // pred_check_branch
      %71 = sbr.rel (0) target = $region33
    $region32: #{tpu_custom_call.1} parent=1 // pred_region
      %s73 = ssub.s32 2048, 2048
      %74 = vsyncadd [#allocation9], %s73
      %s75 = sshll.u32 [#allocation10], 4
      %s76 = int_to_ptr.vmem [resolvable:$true] %s75
      %81 = dma.hbm_to_vmem [thread:$0]  %s7, 2048, %s76, [#allocation9], 128, 128, 8
    $region33: #{tpu_custom_call.1} parent=1 // pred_fallthru
      _
    // Predicated region
    $region34: #{tpu_custom_call.1} parent=1 // pred_check
      _
    $region35: #{tpu_custom_call.1} parent=1 // pred_check_branch
      %83 = sbr.rel (0) target = $region37
    $region36: #{tpu_custom_call.1} parent=1 // pred_region
      _
    $region37: #{tpu_custom_call.1} parent=1 // pred_fallthru
      _
    // Predicated region
    $region38: #{tpu_custom_call.1} parent=1 // pred_check
      _
    $region39: #{tpu_custom_call.1} parent=1 // pred_check_branch
      %85 = sbr.rel (0) target = $region41
    $region40: #{tpu_custom_call.1} parent=1 // pred_region
      %86 = dma.done [#allocation3], 128
    $region41: #{tpu_custom_call.1} parent=1 // pred_fallthru
      _
    // Predicated region
    $region42: #{tpu_custom_call.1} parent=1 // pred_check
      _
    $region43: #{tpu_custom_call.1} parent=1 // pred_check_branch
      %88 = sbr.rel (0) target = $region45
    $region44: #{tpu_custom_call.1} parent=1 // pred_region
      %89 = dma.done [#allocation6], 256
    $region45: #{tpu_custom_call.1} parent=1 // pred_fallthru
      _
    // Predicated region
    $region46: #{tpu_custom_call.1} parent=1 // pred_check
      _
    $region47: #{tpu_custom_call.1} parent=1 // pred_check_branch
      %91 = sbr.rel (0) target = $region49
    $region48: #{tpu_custom_call.1} parent=1 // pred_region
      %92 = dma.done [#allocation6], 512
    $region49: #{tpu_custom_call.1} parent=1 // pred_fallthru
      _
    // Predicated region
    $region50: #{tpu_custom_call.1} parent=1 // pred_check
      _
    $region51: #{tpu_custom_call.1} parent=1 // pred_check_branch
      %94 = sbr.rel (0) target = $region53
    $region52: #{tpu_custom_call.1} parent=1 // pred_region
      %95 = dma.done [#allocation9], 1024
    $region53: #{tpu_custom_call.1} parent=1 // pred_fallthru
      _
    // Predicated region
    $region54: #{tpu_custom_call.1} parent=1 // pred_check
      _
    $region55: #{tpu_custom_call.1} parent=1 // pred_check_branch
      %97 = sbr.rel (0) target = $region57
    $region56: #{tpu_custom_call.1} parent=1 // pred_region
      %98 = dma.done [#allocation9], 2048
    $region57: #{tpu_custom_call.1} parent=1 // pred_fallthru
      _
    %v99 = vld [vmem:[#allocation2] sm:$0xff]
    %v100 = vld [vmem:[#allocation5] sm:$0xff]
    %v101 = vld [vmem:[#allocation5 + $0x8] sm:$0xff]
    %v102 = vld [vmem:[%s2] sm:$0x1]
    %v104 = vlaneseq
    %v105 = vshrl.u32 %v104, 7
    %v106 = vsub.s32 0, %v105
    %v107 = vrot.slane %v102, %v106
    %vm109 = vcmask 130048
    %v111 = vsel %vm109, %v99, 0
    %113 = vmatprep.subr.mxu0 0.0
    %114 = vmatpush1.msra.mxu0 %v100
    %115 = vmatprep.subr.mxu0 0.0
    %116 = vmatpush1.msra.mxu0 %v101
    %117 = vmatprep.subr.mxu0 0.0
    %118 = vmatpush1.msra.mxu0 0.0
    %119 = vmatprep.subr.mxu0 0.0
    %120 = vmatpush1.msra.mxu0 0.0
    %121 = vmatprep.subr.mxu0 0.0
    %122 = vmatpush1.msra.mxu0 0.0
    %123 = vmatprep.subr.mxu0 0.0
    %124 = vmatpush1.msra.mxu0 0.0
    %125 = vmatprep.subr.mxu0 0.0
    %126 = vmatpush1.msra.mxu0 0.0
    %127 = vmatprep.subr.mxu0 0.0
    %128 = vmatpush1.msra.mxu0 0.0
    %129 = vmatprep.subr.mxu0 0.0
    %130 = vmatpush1.msra.mxu0 0.0
    %131 = vmatprep.subr.mxu0 0.0
    %132 = vmatpush1.msra.mxu0 0.0
    %133 = vmatprep.subr.mxu0 0.0
    %134 = vmatpush1.msra.mxu0 0.0
    %135 = vmatprep.subr.mxu0 0.0
    %136 = vmatpush1.msra.mxu0 0.0
    %137 = vmatprep.subr.mxu0 0.0
    %138 = vmatpush1.msra.mxu0 0.0
    %139 = vmatprep.subr.mxu0 0.0
    %140 = vmatpush1.msra.mxu0 0.0
    %141 = vmatprep.subr.mxu0 0.0
    %142 = vmatpush1.msra.mxu0 0.0
    %143 = vmatprep.subr.mxu0 0.0
    %144 = vmatpush1.msra.mxu0 0.0
    %145 = vmatprep.subr.mxu0 0.0
    %146 = vmatpush1.msra.mxu0 0.0
    %147 = vmatprep.subr.mxu0 0.0
    %148 = vmatpush1.msra.mxu0 0.0
    %149 = vmatprep.subr.mxu0 0.0
    %150 = vmatpush1.msra.mxu0 0.0
    %151 = vmatprep.subr.mxu0 0.0
    %152 = vmatpush1.msra.mxu0 0.0
    %153 = vmatprep.subr.mxu0 0.0
    %154 = vmatpush1.msra.mxu0 0.0
    %155 = vmatprep.subr.mxu0 0.0
    %156 = vmatpush1.msra.mxu0 0.0
    %157 = vmatprep.subr.mxu0 0.0
    %158 = vmatpush1.msra.mxu0 0.0
    %159 = vmatprep.subr.mxu0 0.0
    %160 = vmatpush1.msra.mxu0 0.0
    %161 = vmatprep.subr.mxu0 0.0
    %162 = vmatpush1.msra.mxu0 0.0
    %163 = vmatprep.subr.mxu0 0.0
    %164 = vmatpush1.msra.mxu0 0.0
    %165 = vmatprep.subr.mxu0 0.0
    %166 = vmatpush1.msra.mxu0 0.0
    %167 = vmatprep.subr.mxu0 0.0
    %168 = vmatpush1.msra.mxu0 0.0
    %169 = vmatprep.subr.mxu0 0.0
    %170 = vmatpush1.msra.mxu0 0.0
    %171 = vmatprep.subr.mxu0 0.0
    %172 = vmatpush1.msra.mxu0 0.0
    %173 = vmatprep.subr.mxu0 0.0
    %174 = vmatpush1.msra.mxu0 0.0
    %175 = vmatprep.subr.mxu0 0.0
    %176 = vmatpush1.msra.mxu0 0.0
    %177 = vmatprep.mubr.f32.mxu0 0.0
    %178 = vmatmul.mubr.f32.gmra.mrb[0].mxu0 %v111
    %v179 = vpop.f32.mrb[0].mxu0
    %v180 = vadd.f32 %v107, %v179
    %v181 = vpop.f32.mrb[0].mxu0
    %182 = vdwg.mxu0
    %v183 = vmax.f32 %v180, 0.0
    %v184 = vld [vmem:[#allocation7] sm:$0xff]
    %v185 = vld [vmem:[#allocation7 + $0x8] sm:$0xff]
    %v186 = vld [vmem:[#allocation7 + $0x10] sm:$0xff]
    %v187 = vld [vmem:[#allocation7 + $0x18] sm:$0xff]
    %v188 = vld [vmem:[%s4] sm:$0x1]
    %v190 = vlaneseq
    %v191 = vshrl.u32 %v190, 7
    %v192 = vsub.s32 0, %v191
    %v193 = vrot.slane %v188, %v192
    %vm195 = vcmask 261120
    %v197 = vsel %vm195, %v183, 0
    %199 = vmatprep.subr.mxu0 0.0
    %200 = vmatpush1.msra.mxu0 %v184
    %201 = vmatprep.subr.mxu0 0.0
    %202 = vmatpush1.msra.mxu0 %v185
    %203 = vmatprep.subr.mxu0 0.0
    %204 = vmatpush1.msra.mxu0 %v186
    %205 = vmatprep.subr.mxu0 0.0
    %206 = vmatpush1.msra.mxu0 %v187
    %207 = vmatprep.subr.mxu0 0.0
    %208 = vmatpush1.msra.mxu0 0.0
    %209 = vmatprep.subr.mxu0 0.0
    %210 = vmatpush1.msra.mxu0 0.0
    %211 = vmatprep.subr.mxu0 0.0
    %212 = vmatpush1.msra.mxu0 0.0
    %213 = vmatprep.subr.mxu0 0.0
    %214 = vmatpush1.msra.mxu0 0.0
    %215 = vmatprep.subr.mxu0 0.0
    %216 = vmatpush1.msra.mxu0 0.0
    %217 = vmatprep.subr.mxu0 0.0
    %218 = vmatpush1.msra.mxu0 0.0
    %219 = vmatprep.subr.mxu0 0.0
    %220 = vmatpush1.msra.mxu0 0.0
    %221 = vmatprep.subr.mxu0 0.0
    %222 = vmatpush1.msra.mxu0 0.0
    %223 = vmatprep.subr.mxu0 0.0
    %224 = vmatpush1.msra.mxu0 0.0
    %225 = vmatprep.subr.mxu0 0.0
    %226 = vmatpush1.msra.mxu0 0.0
    %227 = vmatprep.subr.mxu0 0.0
    %228 = vmatpush1.msra.mxu0 0.0
    %229 = vmatprep.subr.mxu0 0.0
    %230 = vmatpush1.msra.mxu0 0.0
    %231 = vmatprep.subr.mxu0 0.0
    %232 = vmatpush1.msra.mxu0 0.0
    %233 = vmatprep.subr.mxu0 0.0
    %234 = vmatpush1.msra.mxu0 0.0
    %235 = vmatprep.subr.mxu0 0.0
    %236 = vmatpush1.msra.mxu0 0.0
    %237 = vmatprep.subr.mxu0 0.0
    %238 = vmatpush1.msra.mxu0 0.0
    %239 = vmatprep.subr.mxu0 0.0
    %240 = vmatpush1.msra.mxu0 0.0
    %241 = vmatprep.subr.mxu0 0.0
    %242 = vmatpush1.msra.mxu0 0.0
    %243 = vmatprep.subr.mxu0 0.0
    %244 = vmatpush1.msra.mxu0 0.0
    %245 = vmatprep.subr.mxu0 0.0
    %246 = vmatpush1.msra.mxu0 0.0
    %247 = vmatprep.subr.mxu0 0.0
    %248 = vmatpush1.msra.mxu0 0.0
    %249 = vmatprep.subr.mxu0 0.0
    %250 = vmatpush1.msra.mxu0 0.0
    %251 = vmatprep.subr.mxu0 0.0
    %252 = vmatpush1.msra.mxu0 0.0
    %253 = vmatprep.subr.mxu0 0.0
    %254 = vmatpush1.msra.mxu0 0.0
    %255 = vmatprep.subr.mxu0 0.0
    %256 = vmatpush1.msra.mxu0 0.0
    %257 = vmatprep.subr.mxu0 0.0
    %258 = vmatpush1.msra.mxu0 0.0
    %259 = vmatprep.subr.mxu0 0.0
    %260 = vmatpush1.msra.mxu0 0.0
    %261 = vmatprep.subr.mxu0 0.0
    %262 = vmatpush1.msra.mxu0 0.0
    %263 = vmatprep.mubr.f32.mxu0 0.0
    %264 = vmatmul.mubr.f32.gmra.mrb[0].mxu0 %v197
    %v265 = vpop.f32.mrb[0].mxu0
    %v266 = vadd.f32 %v193, %v265
    %v267 = vpop.f32.mrb[0].mxu0
    %268 = vdwg.mxu0
    %v269 = vmax.f32 %v266, 0.0
    %v270 = vld [vmem:[#allocation8] sm:$0xff]
    %v271 = vld [vmem:[#allocation8 + $0x8] sm:$0xff]
    %v272 = vld [vmem:[#allocation8 + $0x10] sm:$0xff]
    %v273 = vld [vmem:[#allocation8 + $0x18] sm:$0xff]
    %v274 = vld [vmem:[#allocation8 + $0x20] sm:$0xff]
    %v275 = vld [vmem:[#allocation8 + $0x28] sm:$0xff]
    %v276 = vld [vmem:[#allocation8 + $0x30] sm:$0xff]
    %v277 = vld [vmem:[#allocation8 + $0x38] sm:$0xff]
    %v278 = vld [vmem:[%s6] sm:$0x1]
    %v280 = vlaneseq
    %v281 = vshrl.u32 %v280, 7
    %v282 = vsub.s32 0, %v281
    %v283 = vrot.slane %v278, %v282
    %vm285 = vcmask 523264
    %v287 = vsel %vm285, %v269, 0
    %289 = vmatprep.subr.mxu0 0.0
    %290 = vmatpush1.msra.mxu0 %v270
    %291 = vmatprep.subr.mxu0 0.0
    %292 = vmatpush1.msra.mxu0 %v271
    %293 = vmatprep.subr.mxu0 0.0
    %294 = vmatpush1.msra.mxu0 %v272
    %295 = vmatprep.subr.mxu0 0.0
    %296 = vmatpush1.msra.mxu0 %v273
    %297 = vmatprep.subr.mxu0 0.0
    %298 = vmatpush1.msra.mxu0 %v274
    %299 = vmatprep.subr.mxu0 0.0
    %300 = vmatpush1.msra.mxu0 %v275
    %301 = vmatprep.subr.mxu0 0.0
    %302 = vmatpush1.msra.mxu0 %v276
    %303 = vmatprep.subr.mxu0 0.0
    %304 = vmatpush1.msra.mxu0 %v277
    %305 = vmatprep.subr.mxu0 0.0
    %306 = vmatpush1.msra.mxu0 0.0
    %307 = vmatprep.subr.mxu0 0.0
    %308 = vmatpush1.msra.mxu0 0.0
    %309 = vmatprep.subr.mxu0 0.0
    %310 = vmatpush1.msra.mxu0 0.0
    %311 = vmatprep.subr.mxu0 0.0
    %312 = vmatpush1.msra.mxu0 0.0
    %313 = vmatprep.subr.mxu0 0.0
    %314 = vmatpush1.msra.mxu0 0.0
    %315 = vmatprep.subr.mxu0 0.0
    %316 = vmatpush1.msra.mxu0 0.0
    %317 = vmatprep.subr.mxu0 0.0
    %318 = vmatpush1.msra.mxu0 0.0
    %319 = vmatprep.subr.mxu0 0.0
    %320 = vmatpush1.msra.mxu0 0.0
    %321 = vmatprep.subr.mxu0 0.0
    %322 = vmatpush1.msra.mxu0 0.0
    %323 = vmatprep.subr.mxu0 0.0
    %324 = vmatpush1.msra.mxu0 0.0
    %325 = vmatprep.subr.mxu0 0.0
    %326 = vmatpush1.msra.mxu0 0.0
    %327 = vmatprep.subr.mxu0 0.0
    %328 = vmatpush1.msra.mxu0 0.0
    %329 = vmatprep.subr.mxu0 0.0
    %330 = vmatpush1.msra.mxu0 0.0
    %331 = vmatprep.subr.mxu0 0.0
    %332 = vmatpush1.msra.mxu0 0.0
    %333 = vmatprep.subr.mxu0 0.0
    %334 = vmatpush1.msra.mxu0 0.0
    %335 = vmatprep.subr.mxu0 0.0
    %336 = vmatpush1.msra.mxu0 0.0
    %337 = vmatprep.subr.mxu0 0.0
    %338 = vmatpush1.msra.mxu0 0.0
    %339 = vmatprep.subr.mxu0 0.0
    %340 = vmatpush1.msra.mxu0 0.0
    %341 = vmatprep.subr.mxu0 0.0
    %342 = vmatpush1.msra.mxu0 0.0
    %343 = vmatprep.subr.mxu0 0.0
    %344 = vmatpush1.msra.mxu0 0.0
    %345 = vmatprep.subr.mxu0 0.0
    %346 = vmatpush1.msra.mxu0 0.0
    %347 = vmatprep.subr.mxu0 0.0
    %348 = vmatpush1.msra.mxu0 0.0
    %349 = vmatprep.subr.mxu0 0.0
    %350 = vmatpush1.msra.mxu0 0.0
    %351 = vmatprep.subr.mxu0 0.0
    %352 = vmatpush1.msra.mxu0 0.0
    %353 = vmatprep.mubr.f32.mxu0 0.0
    %354 = vmatmul.mubr.f32.gmra.mrb[0].mxu0 %v287
    %v355 = vpop.f32.mrb[0].mxu0
    %v356 = vadd.f32 %v283, %v355
    %v357 = vpop.f32.mrb[0].mxu0
    %358 = vdwg.mxu0
    %v359 = vmax.f32 %v356, 0.0
    %v360 = vld [vmem:[#allocation10] sm:$0xff]
    %v361 = vld [vmem:[#allocation10 + $0x8] sm:$0xff]
    %v362 = vld [vmem:[#allocation10 + $0x10] sm:$0xff]
    %v363 = vld [vmem:[#allocation10 + $0x18] sm:$0xff]
    %v364 = vld [vmem:[#allocation10 + $0x20] sm:$0xff]
    %v365 = vld [vmem:[#allocation10 + $0x28] sm:$0xff]
    %v366 = vld [vmem:[#allocation10 + $0x30] sm:$0xff]
    %v367 = vld [vmem:[#allocation10 + $0x38] sm:$0xff]
    %v368 = vld [vmem:[#allocation10 + $0x40] sm:$0xff]
    %v369 = vld [vmem:[#allocation10 + $0x48] sm:$0xff]
    %v370 = vld [vmem:[#allocation10 + $0x50] sm:$0xff]
    %v371 = vld [vmem:[#allocation10 + $0x58] sm:$0xff]
    %v372 = vld [vmem:[#allocation10 + $0x60] sm:$0xff]
    %v373 = vld [vmem:[#allocation10 + $0x68] sm:$0xff]
    %v374 = vld [vmem:[#allocation10 + $0x70] sm:$0xff]
    %v375 = vld [vmem:[#allocation10 + $0x78] sm:$0xff]
    %v376 = vld [vmem:[%s8] sm:$0x1]
    %v378 = vlaneseq
    %v379 = vshrl.u32 %v378, 7
    %v380 = vsub.s32 0, %v379
    %v381 = vrot.slane %v376, %v380
    %383 = vmatprep.subr.mxu0 0.0
    %384 = vmatpush1.msra.mxu0 %v360
    %385 = vmatprep.subr.mxu0 0.0
    %386 = vmatpush1.msra.mxu0 %v361
    %387 = vmatprep.subr.mxu0 0.0
    %388 = vmatpush1.msra.mxu0 %v362
    %389 = vmatprep.subr.mxu0 0.0
    %390 = vmatpush1.msra.mxu0 %v363
    %391 = vmatprep.subr.mxu0 0.0
    %392 = vmatpush1.msra.mxu0 %v364
    %393 = vmatprep.subr.mxu0 0.0
    %394 = vmatpush1.msra.mxu0 %v365
    %395 = vmatprep.subr.mxu0 0.0
    %396 = vmatpush1.msra.mxu0 %v366
    %397 = vmatprep.subr.mxu0 0.0
    %398 = vmatpush1.msra.mxu0 %v367
    %399 = vmatprep.subr.mxu0 0.0
    %400 = vmatpush1.msra.mxu0 %v368
    %401 = vmatprep.subr.mxu0 0.0
    %402 = vmatpush1.msra.mxu0 %v369
    %403 = vmatprep.subr.mxu0 0.0
    %404 = vmatpush1.msra.mxu0 %v370
    %405 = vmatprep.subr.mxu0 0.0
    %406 = vmatpush1.msra.mxu0 %v371
    %407 = vmatprep.subr.mxu0 0.0
    %408 = vmatpush1.msra.mxu0 %v372
    %409 = vmatprep.subr.mxu0 0.0
    %410 = vmatpush1.msra.mxu0 %v373
    %411 = vmatprep.subr.mxu0 0.0
    %412 = vmatpush1.msra.mxu0 %v374
    %413 = vmatprep.subr.mxu0 0.0
    %414 = vmatpush1.msra.mxu0 %v375
    %415 = vmatprep.subr.mxu0 0.0
    %416 = vmatpush1.msra.mxu0 0.0
    %417 = vmatprep.subr.mxu0 0.0
    %418 = vmatpush1.msra.mxu0 0.0
    %419 = vmatprep.subr.mxu0 0.0
    %420 = vmatpush1.msra.mxu0 0.0
    %421 = vmatprep.subr.mxu0 0.0
    %422 = vmatpush1.msra.mxu0 0.0
    %423 = vmatprep.subr.mxu0 0.0
    %424 = vmatpush1.msra.mxu0 0.0
    %425 = vmatprep.subr.mxu0 0.0
    %426 = vmatpush1.msra.mxu0 0.0
    %427 = vmatprep.subr.mxu0 0.0
    %428 = vmatpush1.msra.mxu0 0.0
    %429 = vmatprep.subr.mxu0 0.0
    %430 = vmatpush1.msra.mxu0 0.0
    %431 = vmatprep.subr.mxu0 0.0
    %432 = vmatpush1.msra.mxu0 0.0
    %433 = vmatprep.subr.mxu0 0.0
    %434 = vmatpush1.msra.mxu0 0.0
    %435 = vmatprep.subr.mxu0 0.0
    %436 = vmatpush1.msra.mxu0 0.0
    %437 = vmatprep.subr.mxu0 0.0
    %438 = vmatpush1.msra.mxu0 0.0
    %439 = vmatprep.subr.mxu0 0.0
    %440 = vmatpush1.msra.mxu0 0.0
    %441 = vmatprep.subr.mxu0 0.0
    %442 = vmatpush1.msra.mxu0 0.0
    %443 = vmatprep.subr.mxu0 0.0
    %444 = vmatpush1.msra.mxu0 0.0
    %445 = vmatprep.subr.mxu0 0.0
    %446 = vmatpush1.msra.mxu0 0.0
    %447 = vmatprep.mubr.f32.mxu0 0.0
    %448 = vmatmul.mubr.f32.gmra.mrb[0].mxu0 %v359
    %v449 = vpop.f32.mrb[0].mxu0
    %v450 = vadd.f32 %v381, %v449
    %v451 = vpop.f32.mrb[0].mxu0
    %452 = vdwg.mxu0
    %v453 = vtanh.pop %v450
    %vm454 = vcmask 195584
    %455 = vst.msk [vmem:[#allocation11] sm:$0xff] %vm454, %v453
    // Predicated region
    $region58: #{tpu_custom_call.1} parent=1 // pred_check
      _
    $region59: #{tpu_custom_call.1} parent=1 // pred_check_branch
      %457 = sbr.rel (0) target = $region61
    $region60: #{tpu_custom_call.1} parent=1 // pred_region
      %s459 = ssub.s32 128, 128
      %460 = vsyncadd [#allocation4], %s459
      %s462 = sshll.u32 [#allocation11], 4
      %s463 = int_to_ptr.vmem [resolvable:$true] %s462
      %465 = dma.vmem_to_hbm [thread:$0]  %s463, 128, %s9, [#allocation4]
    $region61: #{tpu_custom_call.1} parent=1 // pred_fallthru
      _
    // Predicated region
    $region62: #{tpu_custom_call.1} parent=1 // pred_check
      _
    $region63: #{tpu_custom_call.1} parent=1 // pred_check_branch
      %467 = sbr.rel (0) target = $region65
    $region64: #{tpu_custom_call.1} parent=1 // pred_region
      %468 = dma.done [#allocation4], 128
    $region65: #{tpu_custom_call.1} parent=1 // pred_fallthru
      _
    %469 = vsyncpa [#allocation3], 1
    %470 = vsyncpa [#allocation6], 1
    %471 = vsyncpa [#allocation9], 1
    %472 = vsyncpa [#allocation4], 1

</llo_original>
